<compile_context>
chip_gen: v7x
topology: tpu7x:2x2x1
jax: 0.10.0
libtpu: 0.0.40
codegen_flags: <defaults>
</compile_context>

<pallas_src>
import functools

import jax
import jax.numpy as jnp
from jax import lax
from jax.experimental import pallas as pl
from jax.experimental.pallas import tpu as pltpu


def _round_up(x, m):
    return (x + m - 1) // m * m


def _cdiv(a, b):
    return -(-a // b)


def _pick_tile(dim, tile_max, multiple):
    """Balanced tile: ~dim/ceil(dim/tile_max), rounded up to `multiple`.

    Falls back to the full dimension (always a legal block size) when one
    tile covers everything, so ragged dims never force a wrapper-side pad.
    """
    tile_max = max(int(tile_max), 1)
    n = _cdiv(dim, tile_max)
    tile = _round_up(_cdiv(dim, n), multiple)
    if tile >= dim:
        return dim, 1
    return tile, _cdiv(dim, tile)


def _vmem_capacity_bytes():
    try:  # real capacity (v7x: 64 MiB/TC, v5e/v6e: 128 MiB)
        return int(pltpu.get_tpu_info().vmem_capacity_bytes)
    except Exception:
        return 64 << 20  # conservative: smallest across supported chips


def _combined_loss_kernel(logits_ref, gt_ref, piou_ref, out_ref,
                          bce_acc, inter_acc, union_acc,
                          *, tm, tl, m_valid, hw_valid,
                          mask_rows, mask_lanes):
    # Bind grid queries at the top level only (interpret-mode requirement).
    m = pl.program_id(0)
    h = pl.program_id(1)
    nh = pl.num_programs(1)

    @pl.when(h == 0)
    def _init():
        bce_acc[...] = jnp.zeros_like(bce_acc)
        inter_acc[...] = jnp.zeros_like(inter_acc)
        union_acc[...] = jnp.zeros_like(union_acc)

    x = logits_ref[...].astype(jnp.float32)   # (TM, TL)
    y = gt_ref[...].astype(jnp.float32)       # (TM, TL)

    if mask_lanes:
        # HW tail: lanes past HW in the last lane tile hold undefined data
        # (possibly NaN/Inf).  Select (never multiply) them to neutral values:
        #   x = -1e4 -> bce term exactly 0, pred = 0
        #   y = 0    -> intersection / union contributions exactly 0.
        col = h * tl + lax.broadcasted_iota(jnp.int32, (tm, tl), 1)
        lane_ok = col < hw_valid
        x = jnp.where(lane_ok, x, -1e4)
        y = jnp.where(lane_ok, y, 0.0)

    # Numerically-stable BCE-with-logits: max(x,0) - x*y + log1p(exp(-|x|)),
    # written as log(1 + t), t = exp(-|x|) in [0, 1] (accurate there and
    # guaranteed to lower on Mosaic).
    bce = jnp.maximum(x, 0.0) - x * y + jnp.log(1.0 + jnp.exp(-jnp.abs(x)))

    # pred = (sigmoid(x) >= 0.5) <=> (x >= 0).  Keep it as a bool mask and use
    # selects: no float pred, no pred*y multiply, no max(pred, y).
    ge = x >= 0.0
    bce_acc[...] += jnp.sum(bce, axis=-1, keepdims=True)
    inter_acc[...] += jnp.sum(jnp.where(ge, y, 0.0), axis=-1, keepdims=True)
    # binary-gt assumption: logical_or(pred, gt) == where(pred, 1, gt)
    union_acc[...] += jnp.sum(jnp.where(ge, 1.0, y), axis=-1, keepdims=True)
    # TODO(synk): if a v7x bundle dump shows the per-step cross-lane jnp.sum
    # reductions binding on the XLU, switch to (tm, 128) lane-partial
    # accumulators and do the cross-lane reduce only in the finalize branch.

    @pl.when(h == nh - 1)
    def _finalize():
        # NaN when union == 0 for a real row (matches the PyTorch reference);
        # out-of-range rows are removed with selects below.
        actual_iou = inter_acc[...] / union_acc[...]           # (TM, 1)
        piou = piou_ref[...].astype(jnp.float32)               # (TM, 1)
        sq_err = (piou - actual_iou) ** 2
        bce_rows = bce_acc[...]
        if mask_rows:
            rows = m * tm + lax.broadcasted_iota(jnp.int32, (tm, 1), 0)
            valid = rows < m_valid
            bce_rows = jnp.where(valid, bce_rows, 0.0)
            sq_err = jnp.where(valid, sq_err, 0.0)
        bce_sum = jnp.sum(bce_rows)
        iou_sq_sum = jnp.sum(sq_err)
        lane = lax.broadcasted_iota(jnp.int32, (1, 1, 128), 2)
        out_ref[...] = jnp.where(lane == 0, bce_sum,
                                 jnp.where(lane == 1, iou_sq_sum, 0.0))


def combined_loss(logits, gt_masks, predicted_iou, alpha=0.5,
                  *, tm_max=128, tl_max=8192):
    """alpha * BCEWithLogits(logits, gt) + (1-alpha) * MSE(pred_iou, IoU).

    logits, gt_masks: (B, N, H, W); predicted_iou: (B, N). Returns scalar f32.
    Inputs are streamed in their *native* dtypes (pass bf16/int8 gt directly;
    do not pre-cast in the caller -- that costs a full extra HBM pass).
    gt values are assumed binary {0, 1} (as in the reference's logical_or).
    """
    B, N, H, W = logits.shape
    M, HW = B * N, H * W

    logits2d = logits.reshape(M, HW)
    gt2d = gt_masks.reshape(M, HW)
    piou2d = predicted_iou.reshape(M, 1)

    # Sublane granule: 8 rows for 32-bit, 16 for 16-bit, 32 for 8-bit streams.
    min_itemsize = min(logits2d.dtype.itemsize, gt2d.dtype.itemsize)
    sub_mult = max(8, 32 // max(int(min_itemsize), 1))

    tm, g_m = _pick_tile(M, tm_max, sub_mult)
    # Megacore: ensure the parallel M axis has >= 2 tiles (both v7x
    # TensorCores get work) whenever M is large enough to split cleanly.
    if g_m == 1 and M >= 2 * sub_mult:
        tm = _round_up(_cdiv(M, 2), sub_mult)
        g_m = _cdiv(M, tm)

    # VMEM budget from real capacity (with headroom for Mosaic scratch /
    # outputs), plus a lane-tile cap so the double-buffered streams always fit.
    vmem_cap = _vmem_capacity_bytes()
    limit_cap = max(32 << 20, int(vmem_cap * 0.8))
    bytes_per_col = 2 * tm * (logits2d.dtype.itemsize + gt2d.dtype.itemsize)
    tl_budget = max(128, (limit_cap - (8 << 20)) // max(bytes_per_col, 1))
    tl, g_hw = _pick_tile(HW, min(tl_max, tl_budget), 128)

    mask_lanes = g_hw * tl != HW
    mask_rows = g_m * tm != M

    kernel = functools.partial(
        _combined_loss_kernel, tm=tm, tl=tl, m_valid=M, hw_valid=HW,
        mask_rows=mask_rows, mask_lanes=mask_lanes)

    in_tile_bytes = tm * tl * (logits2d.dtype.itemsize + gt2d.dtype.itemsize)
    vmem_limit = int(min(max(2 * in_tile_bytes + (4 << 20), 32 << 20),
                         limit_cap))

    bytes_accessed = (M * HW * (logits2d.dtype.itemsize + gt2d.dtype.itemsize)
                      + M * piou2d.dtype.itemsize + g_m * 128 * 4)
    cost = pl.CostEstimate(flops=13 * M * HW,
                           transcendentals=2 * M * HW,
                           bytes_accessed=int(bytes_accessed))

    partials = pl.pallas_call(
        kernel,
        out_shape=jax.ShapeDtypeStruct((g_m, 1, 128), jnp.float32),
        grid_spec=pltpu.PrefetchScalarGridSpec(
            num_scalar_prefetch=0,
            grid=(g_m, g_hw),
            in_specs=[
                pl.BlockSpec((tm, tl), lambda m, h: (m, h)),
                pl.BlockSpec((tm, tl), lambda m, h: (m, h)),
                pl.BlockSpec((tm, 1), lambda m, h: (m, 0)),
            ],
            out_specs=pl.BlockSpec((1, 1, 128), lambda m, h: (m, 0, 0)),
            scratch_shapes=[
                pltpu.VMEM((tm, 1), jnp.float32),   # bce partial sums
                pltpu.VMEM((tm, 1), jnp.float32),   # intersection
                pltpu.VMEM((tm, 1), jnp.float32),   # union
            ],
        ),
        compiler_params=pltpu.CompilerParams(
            dimension_semantics=("parallel", "arbitrary"),
            vmem_limit_bytes=vmem_limit,
        ),
        cost_estimate=cost,
    )(logits2d, gt2d, piou2d)

    bce_loss = jnp.sum(partials[:, 0, 0]) / (M * HW)
    iou_loss = jnp.sum(partials[:, 0, 1]) / M
    return (alpha * bce_loss + (1.0 - alpha) * iou_loss).astype(jnp.float32)


def _reference(logits, gt_masks, predicted_iou, alpha=0.5):
    """Pure-JAX reference, same math as the PyTorch module."""
    B, N, H, W = logits.shape
    x = logits.reshape(B * N, H * W).astype(jnp.float32)
    y = gt_masks.reshape(B * N, H * W).astype(jnp.float32)
    bce = jnp.mean(jnp.maximum(x, 0.0) - x * y + jnp.log1p(jnp.exp(-jnp.abs(x))))
    pred = (x >= 0.0).astype(jnp.float32)
    inter = jnp.sum(pred * y, axis=-1)
    union = jnp.sum(jnp.logical_or(pred != 0, y != 0).astype(jnp.float32), axis=-1)
    mse = jnp.mean((predicted_iou.reshape(-1).astype(jnp.float32) - inter / union) ** 2)
    return alpha * bce + (1.0 - alpha) * mse


if __name__ == "__main__":
    # Case 1: aligned shapes, f32 inputs, single tile per axis.
    k1, k2, k3 = jax.random.split(jax.random.PRNGKey(0), 3)
    B, N, H, W = 2, 4, 16, 16
    logits = jax.random.normal(k1, (B, N, H, W), dtype=jnp.float32) * 2.0
    gt_masks = (jax.random.uniform(k2, (B, N, H, W)) > 0.5).astype(jnp.float32)
    predicted_iou = jax.random.uniform(k3, (B, N), dtype=jnp.float32)

    loss = combined_loss(logits, gt_masks, predicted_iou)
    jax.block_until_ready(loss)
    ref = _reference(logits, gt_masks, predicted_iou)
    assert jnp.allclose(loss, ref, rtol=1e-5, atol=1e-5), (loss, ref)

    # Case 2: ragged HW with multiple lane tiles (exercises the in-kernel
    # lane-tail mask) + bf16 logits/gt streamed natively.
    k4, k5, k6 = jax.random.split(jax.random.PRNGKey(1), 3)
    B2, N2, H2, W2 = 2, 5, 20, 24
    logits2 = (jax.random.normal(k4, (B2, N2, H2, W2)) * 2.0).astype(jnp.bfloat16)
    gt_masks2 = (jax.random.uniform(k5, (B2, N2, H2, W2)) > 0.5).astype(jnp.bfloat16)
    predicted_iou2 = jax.random.uniform(k6, (B2, N2), dtype=jnp.float32)

    loss2 = combined_loss(logits2, gt_masks2, predicted_iou2, tl_max=128)
    jax.block_until_ready(loss2)
    ref2 = _reference(logits2.astype(jnp.float32),
                      gt_masks2.astype(jnp.float32), predicted_iou2)
    assert jnp.allclose(loss2, ref2, rtol=1e-4, atol=1e-5), (loss2, ref2)

    # Case 3: ragged M with multiple parallel M tiles (exercises the
    # finalize row mask on the partial last M block).
    k7, k8, k9 = jax.random.split(jax.random.PRNGKey(2), 3)
    B3, N3, H3, W3 = 3, 7, 16, 24
    logits3 = jax.random.normal(k7, (B3, N3, H3, W3), dtype=jnp.float32) * 2.0
    gt_masks3 = (jax.random.uniform(k8, (B3, N3, H3, W3)) > 0.5).astype(jnp.float32)
    predicted_iou3 = jax.random.uniform(k9, (B3, N3), dtype=jnp.float32)

    loss3 = combined_loss(logits3, gt_masks3, predicted_iou3,
                          tm_max=8, tl_max=128)
    jax.block_until_ready(loss3)
    ref3 = _reference(logits3, gt_masks3, predicted_iou3)
    assert jnp.allclose(loss3, ref3, rtol=1e-5, atol=1e-5), (loss3, ref3)

    print("KERNEL_OK")
</pallas_src>

<mosaic_0001>
module attributes {stable_mosaic.version = 11 : i64} {
  func.func @_combined_loss_kernel(%arg0: i32, %arg1: i32, %arg2: memref<8x256xf32, #tpu.memory_space<vmem>>, %arg3: memref<8x256xf32, #tpu.memory_space<vmem>>, %arg4: memref<8x1xf32, #tpu.memory_space<vmem>>, %arg5: memref<1x1x128xf32, #tpu.memory_space<vmem>>, %arg6: memref<8x1xf32, #tpu.memory_space<vmem>>, %arg7: memref<8x1xf32, #tpu.memory_space<vmem>>, %arg8: memref<8x1xf32, #tpu.memory_space<vmem>>) attributes {dimension_semantics = [#tpu.dimension_semantics<parallel>, #tpu.dimension_semantics<arbitrary>], iteration_bounds = array<i64: 1, 1>, scalar_prefetch = 0 : i64, scratch_operands = 3 : i64, tpu.core_type = #tpu.core_type<tc>, window_params = [{transform_indices = @transform_0, window_bounds = array<i64: 8, 256>}, {transform_indices = @transform_1, window_bounds = array<i64: 8, 256>}, {transform_indices = @transform_2, window_bounds = array<i64: 8, 1>}, {transform_indices = @transform_3, window_bounds = array<i64: 1, 1, 128>}]} {
    %c0_i32 = arith.constant 0 : i32
    %0 = arith.cmpi eq, %arg1, %c0_i32 : i32
    %1 = arith.extui %0 : i1 to i32
    %c0_i32_0 = arith.constant 0 : i32
    %2 = arith.cmpi ne, %1, %c0_i32_0 : i32
    scf.if %2 {
      %cst_26 = arith.constant 0.000000e+00 : f32
      %41 = vector.broadcast %cst_26 : f32 to vector<8x1xf32>
      %c0_27 = arith.constant 0 : index
      %c0_28 = arith.constant 0 : index
      %42 = vector.load %arg6[%c0_27, %c0_28] : memref<8x1xf32, #tpu.memory_space<vmem>>, vector<8x1xf32>
      tpu.vector_store %arg6[%c0_27, %c0_28], %41 {strides = array<i32>} : memref<8x1xf32, #tpu.memory_space<vmem>>, vector<8x1xf32>,
      %cst_29 = arith.constant 0.000000e+00 : f32
      %43 = vector.broadcast %cst_29 : f32 to vector<8x1xf32>
      %c0_30 = arith.constant 0 : index
      %c0_31 = arith.constant 0 : index
      %44 = vector.load %arg7[%c0_30, %c0_31] : memref<8x1xf32, #tpu.memory_space<vmem>>, vector<8x1xf32>
      tpu.vector_store %arg7[%c0_30, %c0_31], %43 {strides = array<i32>} : memref<8x1xf32, #tpu.memory_space<vmem>>, vector<8x1xf32>,
      %cst_32 = arith.constant 0.000000e+00 : f32
      %45 = vector.broadcast %cst_32 : f32 to vector<8x1xf32>
      %c0_33 = arith.constant 0 : index
      %c0_34 = arith.constant 0 : index
      %46 = vector.load %arg8[%c0_33, %c0_34] : memref<8x1xf32, #tpu.memory_space<vmem>>, vector<8x1xf32>
      tpu.vector_store %arg8[%c0_33, %c0_34], %45 {strides = array<i32>} : memref<8x1xf32, #tpu.memory_space<vmem>>, vector<8x1xf32>,
    } else {
    }
    %c0 = arith.constant 0 : index
    %c0_1 = arith.constant 0 : index
    %3 = vector.load %arg2[%c0, %c0_1] : memref<8x256xf32, #tpu.memory_space<vmem>>, vector<8x256xf32>
    %c0_2 = arith.constant 0 : index
    %c0_3 = arith.constant 0 : index
    %4 = vector.load %arg3[%c0_2, %c0_3] : memref<8x256xf32, #tpu.memory_space<vmem>>, vector<8x256xf32>
    %cst = arith.constant 0.000000e+00 : f32
    %5 = vector.broadcast %cst : f32 to vector<8x256xf32>
    %6 = arith.maximumf %3, %5 : vector<8x256xf32>
    %7 = arith.mulf %3, %4 : vector<8x256xf32>
    %8 = arith.subf %6, %7 : vector<8x256xf32>
    %9 = math.absf %3 : vector<8x256xf32>
    %cst_4 = arith.constant 0.000000e+00 : f32
    %10 = vector.broadcast %cst_4 : f32 to vector<8x256xf32>
    %11 = arith.subf %10, %9 : vector<8x256xf32>
    %12 = math.exp %11 : vector<8x256xf32>
    %cst_5 = arith.constant 1.000000e+00 : f32
    %13 = vector.broadcast %cst_5 : f32 to vector<8x256xf32>
    %14 = arith.addf %13, %12 : vector<8x256xf32>
    %15 = math.log %14 : vector<8x256xf32>
    %16 = arith.addf %8, %15 : vector<8x256xf32>
    %cst_6 = arith.constant 0.000000e+00 : f32
    %17 = vector.broadcast %cst_6 : f32 to vector<8x256xf32>
    %18 = arith.cmpf oge, %3, %17 : vector<8x256xf32>
    %c0_7 = arith.constant 0 : index
    %c0_8 = arith.constant 0 : index
    %19 = vector.load %arg6[%c0_7, %c0_8] : memref<8x1xf32, #tpu.memory_space<vmem>>, vector<8x1xf32>
    %cst_9 = arith.constant dense<0.000000e+00> : vector<8xf32>
    %20 = vector.multi_reduction <add>, %16, %cst_9 [1] : vector<8x256xf32> to vector<8xf32>
    %21 = vector.shape_cast %20 : vector<8xf32> to vector<8x1xf32>
    %22 = arith.addf %19, %21 : vector<8x1xf32>
    %c0_10 = arith.constant 0 : index
    %c0_11 = arith.constant 0 : index
    %23 = vector.load %arg6[%c0_10, %c0_11] : memref<8x1xf32, #tpu.memory_space<vmem>>, vector<8x1xf32>
    tpu.vector_store %arg6[%c0_10, %c0_11], %22 {strides = array<i32>} : memref<8x1xf32, #tpu.memory_space<vmem>>, vector<8x1xf32>,
    %c0_12 = arith.constant 0 : index
    %c0_13 = arith.constant 0 : index
    %24 = vector.load %arg7[%c0_12, %c0_13] : memref<8x1xf32, #tpu.memory_space<vmem>>, vector<8x1xf32>
    %cst_14 = arith.constant 0.000000e+00 : f32
    %25 = vector.broadcast %cst_14 : f32 to vector<8x256xf32>
    %26 = arith.select %18, %4, %25 : vector<8x256xi1>, vector<8x256xf32>
    %cst_15 = arith.constant dense<0.000000e+00> : vector<8xf32>
    %27 = vector.multi_reduction <add>, %26, %cst_15 [1] : vector<8x256xf32> to vector<8xf32>
    %28 = vector.shape_cast %27 : vector<8xf32> to vector<8x1xf32>
    %29 = arith.addf %24, %28 : vector<8x1xf32>
    %c0_16 = arith.constant 0 : index
    %c0_17 = arith.constant 0 : index
    %30 = vector.load %arg7[%c0_16, %c0_17] : memref<8x1xf32, #tpu.memory_space<vmem>>, vector<8x1xf32>
    tpu.vector_store %arg7[%c0_16, %c0_17], %29 {strides = array<i32>} : memref<8x1xf32, #tpu.memory_space<vmem>>, vector<8x1xf32>,
    %c0_18 = arith.constant 0 : index
    %c0_19 = arith.constant 0 : index
    %31 = vector.load %arg8[%c0_18, %c0_19] : memref<8x1xf32, #tpu.memory_space<vmem>>, vector<8x1xf32>
    %cst_20 = arith.constant 1.000000e+00 : f32
    %32 = vector.broadcast %cst_20 : f32 to vector<8x256xf32>
    %33 = arith.select %18, %32, %4 : vector<8x256xi1>, vector<8x256xf32>
    %cst_21 = arith.constant dense<0.000000e+00> : vector<8xf32>
    %34 = vector.multi_reduction <add>, %33, %cst_21 [1] : vector<8x256xf32> to vector<8xf32>
    %35 = vector.shape_cast %34 : vector<8xf32> to vector<8x1xf32>
    %36 = arith.addf %31, %35 : vector<8x1xf32>
    %c0_22 = arith.constant 0 : index
    %c0_23 = arith.constant 0 : index
    %37 = vector.load %arg8[%c0_22, %c0_23] : memref<8x1xf32, #tpu.memory_space<vmem>>, vector<8x1xf32>
    tpu.vector_store %arg8[%c0_22, %c0_23], %36 {strides = array<i32>} : memref<8x1xf32, #tpu.memory_space<vmem>>, vector<8x1xf32>,
    %c0_i32_24 = arith.constant 0 : i32
    %38 = arith.cmpi eq, %arg1, %c0_i32_24 : i32
    %39 = arith.extui %38 : i1 to i32
    %c0_i32_25 = arith.constant 0 : i32
    %40 = arith.cmpi ne, %39, %c0_i32_25 : i32
    scf.if %40 {
      %c0_26 = arith.constant 0 : index
      %c0_27 = arith.constant 0 : index
      %41 = vector.load %arg7[%c0_26, %c0_27] : memref<8x1xf32, #tpu.memory_space<vmem>>, vector<8x1xf32>
      %c0_28 = arith.constant 0 : index
      %c0_29 = arith.constant 0 : index
      %42 = vector.load %arg8[%c0_28, %c0_29] : memref<8x1xf32, #tpu.memory_space<vmem>>, vector<8x1xf32>
      %43 = arith.divf %41, %42 : vector<8x1xf32>
      %c0_30 = arith.constant 0 : index
      %c0_31 = arith.constant 0 : index
      %44 = vector.load %arg4[%c0_30, %c0_31] : memref<8x1xf32, #tpu.memory_space<vmem>>, vector<8x1xf32>
      %45 = arith.subf %44, %43 : vector<8x1xf32>
      %46 = arith.mulf %45, %45 : vector<8x1xf32>
      %c0_32 = arith.constant 0 : index
      %c0_33 = arith.constant 0 : index
      %47 = vector.load %arg6[%c0_32, %c0_33] : memref<8x1xf32, #tpu.memory_space<vmem>>, vector<8x1xf32>
      %48 = vector.shape_cast %47 : vector<8x1xf32> to vector<1x8x1xf32>
      %cst_34 = arith.constant dense<0.000000e+00> : vector<1xf32>
      %49 = vector.multi_reduction <add>, %48, %cst_34 [1, 2] : vector<1x8x1xf32> to vector<1xf32>
      %50 = vector.shape_cast %49 : vector<1xf32> to vector<1x1x1xf32>
      %51 = vector.extract %50[0, 0, 0] : f32 from vector<1x1x1xf32>
      %52 = vector.shape_cast %46 : vector<8x1xf32> to vector<1x8x1xf32>
      %cst_35 = arith.constant dense<0.000000e+00> : vector<1xf32>
      %53 = vector.multi_reduction <add>, %52, %cst_35 [1, 2] : vector<1x8x1xf32> to vector<1xf32>
      %54 = vector.shape_cast %53 : vector<1xf32> to vector<1x1x1xf32>
      %55 = vector.extract %54[0, 0, 0] : f32 from vector<1x1x1xf32>
      %56 = tpu.iota {dimensions = array<i32: 2>} : vector<1x1x128xi32>
      %c0_i32_36 = arith.constant 0 : i32
      %57 = vector.broadcast %c0_i32_36 : i32 to vector<1x1x128xi32>
      %58 = arith.cmpi eq, %56, %57 : vector<1x1x128xi32>
      %c1_i32 = arith.constant 1 : i32
      %59 = vector.broadcast %c1_i32 : i32 to vector<1x1x128xi32>
      %60 = arith.cmpi eq, %56, %59 : vector<1x1x128xi32>
      %cst_37 = arith.constant 0.000000e+00 : f32
      %61 = vector.broadcast %55 : f32 to vector<1x1x128xf32>
      %62 = vector.broadcast %cst_37 : f32 to vector<1x1x128xf32>
      %63 = arith.select %60, %61, %62 : vector<1x1x128xi1>, vector<1x1x128xf32>
      %64 = vector.broadcast %51 : f32 to vector<1x1x128xf32>
      %65 = arith.select %58, %64, %63 : vector<1x1x128xi1>, vector<1x1x128xf32>
      %c0_38 = arith.constant 0 : index
      %c0_39 = arith.constant 0 : index
      %c0_40 = arith.constant 0 : index
      %66 = vector.load %arg5[%c0_38, %c0_39, %c0_40] : memref<1x1x128xf32, #tpu.memory_space<vmem>>, vector<1x1x128xf32>
      tpu.vector_store %arg5[%c0_38, %c0_39, %c0_40], %65 {strides = array<i32>} : memref<1x1x128xf32, #tpu.memory_space<vmem>>, vector<1x1x128xf32>,
    } else {
    }
    return
  }
  func.func @transform_0(%arg0: i32, %arg1: i32) -> (i32, i32) {
    %c0_i32 = arith.constant 0 : i32
    return %arg0, %arg1 : i32, i32
  }
  func.func @transform_1(%arg0: i32, %arg1: i32) -> (i32, i32) {
    %c0_i32 = arith.constant 0 : i32
    return %arg0, %arg1 : i32, i32
  }
  func.func @transform_2(%arg0: i32, %arg1: i32) -> (i32, i32) {
    %c0_i32 = arith.constant 0 : i32
    %c0_i32_0 = arith.constant 0 : i32
    return %arg0, %c0_i32 : i32, i32
  }
  func.func @transform_3(%arg0: i32, %arg1: i32) -> (i32, i32, i32) {
    %c0_i32 = arith.constant 0 : i32
    %c0_i32_0 = arith.constant 0 : i32
    %c0_i32_1 = arith.constant 0 : i32
    return %arg0, %c0_i32, %c0_i32_0 : i32, i32, i32
  }
}

</mosaic_0001>

<llo_original>
// kernel: tpu_custom_call.1
$region0: #{tpu_custom_call.1}
  #allocation0 [shape = 'u32[]', space=smem, size = 0x4, offset = 0x4, fixed_abs, tag = 'smem constant byte address 0x4 - core index']
  #allocation1 [shape = 'u32[144,128]{1,0:T(1,128)}', space=vmem, size = 0x12000, scoped, tag = 'internal scratch']
  #allocation2 [shape = 'f32[8,1]{1,0:T(8,128)}', space=vmem, size = 0x1000, scoped, tag = 'scratch operand']
  #allocation3 [shape = 'f32[8,1]{1,0:T(8,128)}', space=vmem, size = 0x1000, scoped, tag = 'scratch operand']
  #allocation4 [shape = 'f32[8,1]{1,0:T(8,128)}', space=vmem, size = 0x1000, scoped, tag = 'scratch operand']
  %s0 = inlined_call_operand.hbm [shape: f32[8,256], index: 0, kind: input, shape index: {}]
  %s1 = inlined_call_operand.hbm [shape: f32[8,256], index: 1, kind: input, shape index: {}]
  %s2 = inlined_call_operand.vmem [shape: f32[8,1], index: 2, kind: input, shape index: {}]
  %s3 = inlined_call_operand.hbm [shape: f32[1,1,128], index: 3, kind: output, shape index: {}]
  %s4 = sld [smem:[#allocation0]]
  $region38: #{tpu_custom_call.1} parent=0
    _
  %s6 = ssub.s32 1, %s4
  %s7 = scalar_select 0, %s6, %s4
  $region1: #{tpu_custom_call.1} parent=0
    #allocation5 [shape = 'u8[8192]{0}', space=vmem, size = 0x2000, scoped, tag = 'input window, operand 0, single buffered']
    #allocation6 [shape = 's32[1]{0}', space=sflag, size = 0x4, scoped, tag = 'scoped memory for tpu_custom_call.1']
    #allocation7 [shape = 's32[1]{0}', space=sflag, size = 0x4, scoped, tag = 'scoped memory for tpu_custom_call.1']
    #allocation8 [shape = 'u8[8192]{0}', space=vmem, size = 0x2000, scoped, tag = 'input window, operand 1, single buffered']
    #allocation9 [shape = 's32[1]{0}', space=sflag, size = 0x4, scoped, tag = 'scoped memory for tpu_custom_call.1']
    #allocation10 [shape = 'u8[512]{0}', space=vmem, size = 0x400, scoped, tag = 'output window, operand 0, single buffered']
    %8 = vsyncpa [#allocation6], 0
    %9 = vsyncpa [#allocation9], 0
    %10 = vsyncpa [#allocation7], 0
    // Predicated region
    $region2: #{tpu_custom_call.1} parent=1 // pred_check
      _
    $region3: #{tpu_custom_call.1} parent=1 // pred_check_branch
      %12 = sbr.rel (0) target = $region5
    $region4: #{tpu_custom_call.1} parent=1 // pred_region
      %s14 = ssub.s32 256, 256
      %15 = vsyncadd [#allocation6], %s14
      %s17 = sshll.u32 [#allocation5], 4
      %s18 = int_to_ptr.vmem [resolvable:$true] %s17
      %20 = dma.hbm_to_vmem [thread:$0]  %s0, 256, %s18, [#allocation6]
    $region5: #{tpu_custom_call.1} parent=1 // pred_fallthru
      _
    // Predicated region
    $region6: #{tpu_custom_call.1} parent=1 // pred_check
      _
    $region7: #{tpu_custom_call.1} parent=1 // pred_check_branch
      %22 = sbr.rel (0) target = $region9
    $region8: #{tpu_custom_call.1} parent=1 // pred_region
      %s24 = ssub.s32 256, 256
      %25 = vsyncadd [#allocation9], %s24
      %s27 = sshll.u32 [#allocation8], 4
      %s28 = int_to_ptr.vmem [resolvable:$true] %s27
      %30 = dma.hbm_to_vmem [thread:$0]  %s1, 256, %s28, [#allocation9]
    $region9: #{tpu_custom_call.1} parent=1 // pred_fallthru
      _
    // Predicated region
    $region10: #{tpu_custom_call.1} parent=1 // pred_check
      _
    $region11: #{tpu_custom_call.1} parent=1 // pred_check_branch
      %32 = sbr.rel (0) target = $region13
    $region12: #{tpu_custom_call.1} parent=1 // pred_region
      _
    $region13: #{tpu_custom_call.1} parent=1 // pred_fallthru
      _
    // Predicated region
    $region14: #{tpu_custom_call.1} parent=1 // pred_check
      _
    $region15: #{tpu_custom_call.1} parent=1 // pred_check_branch
      %34 = sbr.rel (0) target = $region17
    $region16: #{tpu_custom_call.1} parent=1 // pred_region
      %35 = dma.done [#allocation6], 256
    $region17: #{tpu_custom_call.1} parent=1 // pred_fallthru
      _
    // Predicated region
    $region18: #{tpu_custom_call.1} parent=1 // pred_check
      _
    $region19: #{tpu_custom_call.1} parent=1 // pred_check_branch
      %37 = sbr.rel (0) target = $region21
    $region20: #{tpu_custom_call.1} parent=1 // pred_region
      %38 = dma.done [#allocation9], 256
    $region21: #{tpu_custom_call.1} parent=1 // pred_fallthru
      _
    %p39 = scmp.eq.s32.totalorder 0, 0
    // Predicated region
    $region22: #{tpu_custom_call.1} parent=1 // pred_check
      %p40 = pneg %p39
    $region23: #{tpu_custom_call.1} parent=1 // pred_check_branch
      %42 = sbr.rel (%p40) target = $region25
    $region24: #{tpu_custom_call.1} parent=1 // pred_region
      %vm43 = vcmask 7168
      %44 = vst.msk [vmem:[#allocation2] sm:$0xff] %vm43, 0.0
      %45 = vst.msk [vmem:[#allocation3] sm:$0xff] %vm43, 0.0
      %46 = vst.msk [vmem:[#allocation4] sm:$0xff] %vm43, 0.0
    $region25: #{tpu_custom_call.1} parent=1 // pred_fallthru
      _
    %v47 = vld [vmem:[#allocation5] sm:$0xff]
    %v48 = vld [vmem:[#allocation5 + $0x8] sm:$0xff]
    %v49 = vld [vmem:[#allocation8] sm:$0xff]
    %v50 = vld [vmem:[#allocation8 + $0x8] sm:$0xff]
    %v51 = vmax.f32 %v47, 0.0
    %v52 = vmax.f32 %v48, 0.0
    %v53 = vmul.f32 %v47, %v49
    %v54 = vmul.f32 %v48, %v50
    %v55 = vsub.f32 %v51, %v53
    %v56 = vsub.f32 %v52, %v54
    %v57 = vand.u32 2147483647, %v47
    %v58 = vand.u32 2147483647, %v48
    %v59 = vsub.f32 0.0, %v57
    %v60 = vsub.f32 0.0, %v58
    %v61 = vmul.f32 %v59, 1.442695
    %v62 = vpow.pop %v61
    %v63 = vmul.f32 %v60, 1.442695
    %v64 = vpow.pop %v63
    %v65 = vadd.f32 %v62, 1.0
    %v66 = vadd.f32 %v64, 1.0
    %v67 = vlog2.pop %v65
    %v68 = vmul.f32 %v67, 0.6931472
    %v69 = vlog2.pop %v66
    %v70 = vmul.f32 %v69, 0.6931472
    %v71 = vadd.f32 %v55, %v68
    %v72 = vadd.f32 %v56, %v70
    %vm73 = vcmp.ge.f32.partialorder %v47, 0.0
    %vm74 = vcmp.ge.f32.partialorder %v48, 0.0
    %v75 = vld [vmem:[#allocation2] sm:$0xff]
    %v76 = vadd.f32 %v71, %v72
    %77 = vadd.xlane.f32.xlu0 %v76
    %v78 = vpop.xlane.xlu0 %77
    %v79 = vadd.f32 %v75, %v78
    %vm80 = vcmask 7168
    %81 = vst.msk [vmem:[#allocation2] sm:$0xff] %vm80, %v79
    %v82 = vld [vmem:[#allocation3] sm:$0xff]
    %v83 = vsel %vm73, %v49, 0.0
    %v84 = vsel %vm74, %v50, 0.0
    %v85 = vadd.f32 %v83, %v84
    %86 = vadd.xlane.f32.xlu0 %v85
    %v87 = vpop.xlane.xlu0 %86
    %v88 = vadd.f32 %v82, %v87
    %89 = vst.msk [vmem:[#allocation3] sm:$0xff] %vm80, %v88
    %v90 = vld [vmem:[#allocation4] sm:$0xff]
    %v91 = vsel %vm73, 1.0, %v49
    %v92 = vsel %vm74, 1.0, %v50
    %v93 = vadd.f32 %v91, %v92
    %94 = vadd.xlane.f32.xlu0 %v93
    %v95 = vpop.xlane.xlu0 %94
    %v96 = vadd.f32 %v90, %v95
    %97 = vst.msk [vmem:[#allocation4] sm:$0xff] %vm80, %v96
    // Predicated region
    $region26: #{tpu_custom_call.1} parent=1 // pred_check
      %p98 = pneg %p39
    $region27: #{tpu_custom_call.1} parent=1 // pred_check_branch
      %100 = sbr.rel (%p98) target = $region29
    $region28: #{tpu_custom_call.1} parent=1 // pred_region
      %v101 = vld [vmem:[#allocation3] sm:$0xff]
      %v102 = vld [vmem:[#allocation4] sm:$0xff]
      %v103 = vrcp.pop %v102
      %v104 = vmul.f32 %v101, %v103
      %v105 = vld [vmem:[%s2] sm:$0xff]
      %v106 = vsub.f32 %v105, %v104
      %v107 = vmul.f32 %v106, %v106
      %v108 = vld [vmem:[#allocation2] sm:$0xff]
      %v109 = vsel %vm80, %v108, 0.0
      %110 = vadd.xlane.f32.xlu0 %v109
      %v111 = vpop.xlane.xlu0 %110
      %v112 = vrot.slane %v111, 4
      %v113 = vadd.f32 %v111, %v112
      %v114 = vrot.slane %v113, 2
      %v115 = vadd.f32 %v113, %v114
      %v116 = vrot.slane %v115, 1
      %v117 = vadd.f32 %v115, %v116
      %s118 = vtos %v117
      %v119 = vsel %vm80, %v107, 0.0
      %120 = vadd.xlane.f32.xlu0 %v119
      %v121 = vpop.xlane.xlu0 %120
      %v122 = vrot.slane %v121, 4
      %v123 = vadd.f32 %v121, %v122
      %v124 = vrot.slane %v123, 2
      %v125 = vadd.f32 %v123, %v124
      %v126 = vrot.slane %v125, 1
      %v127 = vadd.f32 %v125, %v126
      %s128 = vtos %v127
      %v129 = vlaneseq
      %v130 = vand.u32 %v129, 127
      %vm131 = vcmp.eq.s32.totalorder %v130, 0
      %vm132 = vcmp.eq.s32.totalorder %v130, 1
      %v133 = vstv %s128
      %v134 = vsel %vm132, %v133, 0.0
      %v135 = vstv %s118
      %v136 = vsel %vm131, %v135, %v134
      %137 = vst [vmem:[#allocation10] sm:$0x1] %v136
    $region29: #{tpu_custom_call.1} parent=1 // pred_fallthru
      _
    // Predicated region
    $region30: #{tpu_custom_call.1} parent=1 // pred_check
      _
    $region31: #{tpu_custom_call.1} parent=1 // pred_check_branch
      %139 = sbr.rel (0) target = $region33
    $region32: #{tpu_custom_call.1} parent=1 // pred_region
      %s141 = ssub.s32 16, 16
      %142 = vsyncadd [#allocation7], %s141
      %s144 = sshll.u32 [#allocation10], 4
      %s145 = int_to_ptr.vmem [resolvable:$true] %s144
      %147 = dma.vmem_to_hbm [thread:$0]  %s145, 16, %s3, [#allocation7]
    $region33: #{tpu_custom_call.1} parent=1 // pred_fallthru
      _
    // Predicated region
    $region34: #{tpu_custom_call.1} parent=1 // pred_check
      _
    $region35: #{tpu_custom_call.1} parent=1 // pred_check_branch
      %149 = sbr.rel (0) target = $region37
    $region36: #{tpu_custom_call.1} parent=1 // pred_region
      %150 = dma.done [#allocation7], 16
    $region37: #{tpu_custom_call.1} parent=1 // pred_fallthru
      _
    %151 = vsyncpa [#allocation6], 1
    %152 = vsyncpa [#allocation9], 1
    %153 = vsyncpa [#allocation7], 1

</llo_original>
